<compile_context>
chip_gen: v7x
topology: tpu7x:2x2x1
jax: 0.10.0
libtpu: 0.0.40
codegen_flags: <defaults>
</compile_context>

<pallas_src>
import functools

import jax
import jax.numpy as jnp
from jax.experimental import pallas as pl
from jax.experimental.pallas import tpu as pltpu


def _finder_kernel(expr_ref, sub_ref, pos_ref, score_ref, *, pad_idx):
    # expr_ref : (LP, Bt) int32  tokens, last Ls rows are -1 sentinels (match nothing)
    # sub_ref  : (Ls, Bt) int32  sub-expression tokens (pad rows masked in-kernel)
    # pos_ref  : (1, Bt)  int32  argmax position over p (first max wins)
    # score_ref: (1, Bt)  f32    max correlation score
    lp, bt = expr_ref.shape
    ls = sub_ref.shape[0]
    p = lp - ls + 1  # = Le + 1 valid sliding positions

    # Sliding token-equality count, unrolled over the (small) filter length.
    # Slice the VMEM ref per step; keep only the (P, Bt) accumulator live.
    scores = jnp.zeros((p, bt), jnp.int32)
    for t in range(ls):
        window = expr_ref[t:t + p, :]                      # (P, Bt)
        sub_t = sub_ref[t:t + 1, :]                        # (1, Bt) broadcast over P
        hit = (window == sub_t) & (sub_t != pad_idx)       # pad rows contribute 0
        scores = scores + hit.astype(jnp.int32)

    # max / first-argmax over the position axis (sublanes); batch stays on lanes.
    smax = jnp.max(scores, axis=0, keepdims=True)                      # (1, Bt)
    idx = jax.lax.broadcasted_iota(jnp.int32, (p, bt), 0)
    first = jnp.min(jnp.where(scores == smax, idx, p), axis=0, keepdims=True)

    pos_ref[...] = first
    score_ref[...] = smax.astype(jnp.float32)


def _pick_batch_tile(b):
    # Batch lives on the lane axis, so a partial tile must be a multiple of 128
    # (and divide B).  Small batches use a single block (grid of one step).
    for bt in (512, 256, 128):
        if b > bt and b % bt == 0:
            return bt
    return b


def finder_forward(expression, sub_expression, vocab_size, pad_idx):
    """expression: (B, Le) int tokens, sub_expression: (B, Ls) int tokens.

    Returns (position (B,) int32, score (B, 1) f32) — matching the PyTorch
    module's (position.flatten(), score.squeeze(0)).
    # TODO(synk): PyTorch argmax returns int64; we emit int32 (JAX default).
    """
    del vocab_size  # not needed in the integer-comparison formulation
    B, Le = expression.shape
    _, Ls = sub_expression.shape
    P = Le + 1
    LP = Le + Ls

    # Batch on lanes; append Ls sentinel (-1) rows: they never match a real
    # token, exactly like the zero one-hot filler rows in the PyTorch forward.
    expr_t = expression.astype(jnp.int32).T                             # (Le, B)
    expr_pad = jnp.concatenate(
        [expr_t, jnp.full((Ls, B), -1, jnp.int32)], axis=0)             # (LP, B)
    sub_t = sub_expression.astype(jnp.int32).T                          # (Ls, B)

    Bt = _pick_batch_tile(B)
    grid = (B // Bt,)

    kernel = functools.partial(_finder_kernel, pad_idx=int(pad_idx))

    cost = pl.CostEstimate(
        flops=2 * B * P * Ls,
        transcendentals=0,
        bytes_accessed=4 * (LP * B + Ls * B) + 8 * B,
    )

    pos, score = pl.pallas_call(
        kernel,
        grid_spec=pl.GridSpec(
            grid=grid,
            in_specs=[
                pl.BlockSpec((LP, Bt), lambda i: (0, i)),
                pl.BlockSpec((Ls, Bt), lambda i: (0, i)),
            ],
            out_specs=(
                pl.BlockSpec((1, Bt), lambda i: (0, i)),
                pl.BlockSpec((1, Bt), lambda i: (0, i)),
            ),
        ),
        out_shape=(
            jax.ShapeDtypeStruct((1, B), jnp.int32),
            jax.ShapeDtypeStruct((1, B), jnp.float32),
        ),
        compiler_params=pltpu.CompilerParams(
            dimension_semantics=("parallel",)),
        cost_estimate=cost,
    )(expr_pad, sub_t)

    return pos.reshape(B), score.reshape(B, 1)


def _finder_reference(expression, sub_expression, vocab_size, pad_idx):
    """Pure-JAX reference of the PyTorch forward (one-hot conv) for verification."""
    B, Le = expression.shape
    _, Ls = sub_expression.shape
    V = vocab_size
    expr = jax.nn.one_hot(expression, V, dtype=jnp.float32)
    expr = jnp.concatenate([expr, jnp.zeros((B, Ls, V), jnp.float32)], axis=1)
    sub = jax.nn.one_hot(sub_expression, V, dtype=jnp.float32)
    sub = jnp.where((sub_expression == pad_idx)[..., None], 0.0, sub)
    P = Le + 1
    scores = jnp.stack(
        [jnp.sum(expr[:, p:p + Ls, :] * sub, axis=(1, 2)) for p in range(P)],
        axis=1)                                                        # (B, P)
    return jnp.argmax(scores, axis=1).astype(jnp.int32), \
           jnp.max(scores, axis=1, keepdims=True)


if __name__ == "__main__":
    # Small, deterministic synthetic inputs (vocabulary size V, pad index 0).
    B, Le, Ls, V = 2, 16, 4, 16
    PAD = 0

    key = jax.random.PRNGKey(0)
    k1, k2 = jax.random.split(key)
    expression = jax.random.randint(k1, (B, Le), 1, V, dtype=jnp.int32)
    sub_expression = jax.random.randint(k2, (B, Ls), 1, V, dtype=jnp.int32)
    # Plant the sub-expression inside the expression and add a pad token,
    # so the "find" has a meaningful answer.
    expression = expression.at[0, 5:5 + Ls].set(sub_expression[0])
    sub_expression = sub_expression.at[1, Ls - 1].set(PAD)
    expression = expression.at[1, 9:9 + Ls - 1].set(sub_expression[1, :Ls - 1])

    pos, score = finder_forward(expression, sub_expression, V, PAD)
    jax.block_until_ready((pos, score))

    ref_pos, ref_score = _finder_reference(expression, sub_expression, V, PAD)
    assert pos.shape == (B,) and score.shape == (B, 1)
    assert jnp.array_equal(pos, ref_pos), (pos, ref_pos)
    assert jnp.allclose(score, ref_score), (score, ref_score)

    print("KERNEL_OK")
</pallas_src>

<mosaic_0001>
module attributes {stable_mosaic.version = 11 : i64} {
  func.func @_finder_kernel(%arg0: i32, %arg1: memref<20x2xi32, #tpu.memory_space<vmem>>, %arg2: memref<4x2xi32, #tpu.memory_space<vmem>>, %arg3: memref<1x2xi32, #tpu.memory_space<vmem>>, %arg4: memref<1x2xf32, #tpu.memory_space<vmem>>) attributes {dimension_semantics = [#tpu.dimension_semantics<parallel>], iteration_bounds = array<i64: 1>, scalar_prefetch = 0 : i64, scratch_operands = 0 : i64, tpu.core_type = #tpu.core_type<tc>, window_params = [{transform_indices = @transform_0, window_bounds = array<i64: 20, 2>}, {transform_indices = @transform_1, window_bounds = array<i64: 4, 2>}, {transform_indices = @transform_2, window_bounds = array<i64: 1, 2>}, {transform_indices = @transform_3, window_bounds = array<i64: 1, 2>}]} {
    %c0_i32 = arith.constant 0 : i32
    %0 = vector.broadcast %c0_i32 : i32 to vector<17x2xi32>
    %c0 = arith.constant 0 : index
    %c0_0 = arith.constant 0 : index
    %1 = vector.load %arg1[%c0, %c0_0] : memref<20x2xi32, #tpu.memory_space<vmem>>, vector<17x2xi32>
    %c0_1 = arith.constant 0 : index
    %c0_2 = arith.constant 0 : index
    %2 = vector.load %arg2[%c0_1, %c0_2] : memref<4x2xi32, #tpu.memory_space<vmem>>, vector<1x2xi32>
    %3 = vector.broadcast %2 : vector<1x2xi32> to vector<17x2xi32>
    %4 = arith.cmpi eq, %1, %3 : vector<17x2xi32>
    %c0_i32_3 = arith.constant 0 : i32
    %5 = vector.broadcast %c0_i32_3 : i32 to vector<1x2xi32>
    %6 = arith.cmpi ne, %2, %5 : vector<1x2xi32>
    %7 = vector.broadcast %6 : vector<1x2xi1> to vector<17x2xi1>
    %8 = arith.andi %4, %7 : vector<17x2xi1>
    %9 = arith.extui %8 : vector<17x2xi1> to vector<17x2xi32>
    %10 = arith.addi %0, %9 : vector<17x2xi32>
    %c1 = arith.constant 1 : index
    %c0_4 = arith.constant 0 : index
    %11 = vector.load %arg1[%c1, %c0_4] : memref<20x2xi32, #tpu.memory_space<vmem>>, vector<17x2xi32>
    %c1_5 = arith.constant 1 : index
    %c0_6 = arith.constant 0 : index
    %12 = vector.load %arg2[%c1_5, %c0_6] : memref<4x2xi32, #tpu.memory_space<vmem>>, vector<1x2xi32>
    %13 = vector.broadcast %12 : vector<1x2xi32> to vector<17x2xi32>
    %14 = arith.cmpi eq, %11, %13 : vector<17x2xi32>
    %c0_i32_7 = arith.constant 0 : i32
    %15 = vector.broadcast %c0_i32_7 : i32 to vector<1x2xi32>
    %16 = arith.cmpi ne, %12, %15 : vector<1x2xi32>
    %17 = vector.broadcast %16 : vector<1x2xi1> to vector<17x2xi1>
    %18 = arith.andi %14, %17 : vector<17x2xi1>
    %19 = arith.extui %18 : vector<17x2xi1> to vector<17x2xi32>
    %20 = arith.addi %10, %19 : vector<17x2xi32>
    %c2 = arith.constant 2 : index
    %c0_8 = arith.constant 0 : index
    %21 = vector.load %arg1[%c2, %c0_8] : memref<20x2xi32, #tpu.memory_space<vmem>>, vector<17x2xi32>
    %c2_9 = arith.constant 2 : index
    %c0_10 = arith.constant 0 : index
    %22 = vector.load %arg2[%c2_9, %c0_10] : memref<4x2xi32, #tpu.memory_space<vmem>>, vector<1x2xi32>
    %23 = vector.broadcast %22 : vector<1x2xi32> to vector<17x2xi32>
    %24 = arith.cmpi eq, %21, %23 : vector<17x2xi32>
    %c0_i32_11 = arith.constant 0 : i32
    %25 = vector.broadcast %c0_i32_11 : i32 to vector<1x2xi32>
    %26 = arith.cmpi ne, %22, %25 : vector<1x2xi32>
    %27 = vector.broadcast %26 : vector<1x2xi1> to vector<17x2xi1>
    %28 = arith.andi %24, %27 : vector<17x2xi1>
    %29 = arith.extui %28 : vector<17x2xi1> to vector<17x2xi32>
    %30 = arith.addi %20, %29 : vector<17x2xi32>
    %c3 = arith.constant 3 : index
    %c0_12 = arith.constant 0 : index
    %31 = vector.load %arg1[%c3, %c0_12] : memref<20x2xi32, #tpu.memory_space<vmem>>, vector<17x2xi32>
    %c3_13 = arith.constant 3 : index
    %c0_14 = arith.constant 0 : index
    %32 = vector.load %arg2[%c3_13, %c0_14] : memref<4x2xi32, #tpu.memory_space<vmem>>, vector<1x2xi32>
    %33 = vector.broadcast %32 : vector<1x2xi32> to vector<17x2xi32>
    %34 = arith.cmpi eq, %31, %33 : vector<17x2xi32>
    %c0_i32_15 = arith.constant 0 : i32
    %35 = vector.broadcast %c0_i32_15 : i32 to vector<1x2xi32>
    %36 = arith.cmpi ne, %32, %35 : vector<1x2xi32>
    %37 = vector.broadcast %36 : vector<1x2xi1> to vector<17x2xi1>
    %38 = arith.andi %34, %37 : vector<17x2xi1>
    %39 = arith.extui %38 : vector<17x2xi1> to vector<17x2xi32>
    %40 = arith.addi %30, %39 : vector<17x2xi32>
    %cst = arith.constant dense<-2147483648> : vector<2xi32>
    %41 = vector.multi_reduction <maxsi>, %40, %cst [0] : vector<17x2xi32> to vector<2xi32>
    %42 = vector.shape_cast %41 : vector<2xi32> to vector<1x2xi32>
    %43 = tpu.iota {dimensions = array<i32: 0>} : vector<17x2xi32>
    %44 = vector.broadcast %42 : vector<1x2xi32> to vector<17x2xi32>
    %45 = arith.cmpi eq, %40, %44 : vector<17x2xi32>
    %c17_i32 = arith.constant 17 : i32
    %46 = vector.broadcast %c17_i32 : i32 to vector<17x2xi32>
    %47 = arith.select %45, %43, %46 : vector<17x2xi1>, vector<17x2xi32>
    %cst_16 = arith.constant dense<2147483647> : vector<2xi32>
    %48 = vector.multi_reduction <minsi>, %47, %cst_16 [0] : vector<17x2xi32> to vector<2xi32>
    %49 = vector.shape_cast %48 : vector<2xi32> to vector<1x2xi32>
    %c0_17 = arith.constant 0 : index
    %c0_18 = arith.constant 0 : index
    %50 = vector.load %arg3[%c0_17, %c0_18] : memref<1x2xi32, #tpu.memory_space<vmem>>, vector<1x2xi32>
    tpu.vector_store %arg3[%c0_17, %c0_18], %49 {strides = array<i32>} : memref<1x2xi32, #tpu.memory_space<vmem>>, vector<1x2xi32>,
    %51 = arith.sitofp %42 : vector<1x2xi32> to vector<1x2xf32>
    %c0_19 = arith.constant 0 : index
    %c0_20 = arith.constant 0 : index
    %52 = vector.load %arg4[%c0_19, %c0_20] : memref<1x2xf32, #tpu.memory_space<vmem>>, vector<1x2xf32>
    tpu.vector_store %arg4[%c0_19, %c0_20], %51 {strides = array<i32>} : memref<1x2xf32, #tpu.memory_space<vmem>>, vector<1x2xf32>,
    return
  }
  func.func @transform_0(%arg0: i32) -> (i32, i32) {
    %c0_i32 = arith.constant 0 : i32
    %c0_i32_0 = arith.constant 0 : i32
    return %c0_i32, %arg0 : i32, i32
  }
  func.func @transform_1(%arg0: i32) -> (i32, i32) {
    %c0_i32 = arith.constant 0 : i32
    %c0_i32_0 = arith.constant 0 : i32
    return %c0_i32, %arg0 : i32, i32
  }
  func.func @transform_2(%arg0: i32) -> (i32, i32) {
    %c0_i32 = arith.constant 0 : i32
    %c0_i32_0 = arith.constant 0 : i32
    return %c0_i32, %arg0 : i32, i32
  }
  func.func @transform_3(%arg0: i32) -> (i32, i32) {
    %c0_i32 = arith.constant 0 : i32
    %c0_i32_0 = arith.constant 0 : i32
    return %c0_i32, %arg0 : i32, i32
  }
}

</mosaic_0001>

<llo_original>
// kernel: tpu_custom_call.1
$region0: #{tpu_custom_call.1}
  #allocation0 [shape = 'u32[]', space=smem, size = 0x4, offset = 0x4, fixed_abs, tag = 'smem constant byte address 0x4 - core index']
  #allocation1 [shape = 'u32[144,128]{1,0:T(1,128)}', space=vmem, size = 0x12000, scoped, tag = 'internal scratch']
  %s0 = inlined_call_operand.vmem [shape: s32[20,2], index: 0, kind: input, shape index: {}]
  %s1 = inlined_call_operand.vmem [shape: s32[4,2], index: 1, kind: input, shape index: {}]
  %s2 = inlined_call_operand.hbm [shape: s32[1,2], index: 2, kind: output, shape index: {0}]
  %s3 = inlined_call_operand.hbm [shape: f32[1,2], index: 3, kind: output, shape index: {1}]
  %4 = xla_tuple %s2, %s3
  %s5 = sld [smem:[#allocation0]]
  $region26: #{tpu_custom_call.1} parent=0
    _
  %s7 = ssub.s32 1, %s5
  %s8 = scalar_select 0, %s7, %s5
  $region1: #{tpu_custom_call.1} parent=0
    #allocation2 [shape = 'u8[512]{0}', space=vmem, size = 0x400, scoped, tag = 'output window, operand 0, single buffered']
    #allocation3 [shape = 's32[1]{0}', space=sflag, size = 0x4, scoped, tag = 'scoped memory for tpu_custom_call.1']
    #allocation4 [shape = 'u8[512]{0}', space=vmem, size = 0x400, scoped, tag = 'output window, operand 1, single buffered']
    #allocation5 [shape = 's32[1]{0}', space=sflag, size = 0x4, scoped, tag = 'scoped memory for tpu_custom_call.1']
    %9 = vsyncpa [#allocation3], 0
    %10 = vsyncpa [#allocation5], 0
    // Predicated region
    $region2: #{tpu_custom_call.1} parent=1 // pred_check
      _
    $region3: #{tpu_custom_call.1} parent=1 // pred_check_branch
      %12 = sbr.rel (0) target = $region5
    $region4: #{tpu_custom_call.1} parent=1 // pred_region
      _
    $region5: #{tpu_custom_call.1} parent=1 // pred_fallthru
      _
    // Predicated region
    $region6: #{tpu_custom_call.1} parent=1 // pred_check
      _
    $region7: #{tpu_custom_call.1} parent=1 // pred_check_branch
      %14 = sbr.rel (0) target = $region9
    $region8: #{tpu_custom_call.1} parent=1 // pred_region
      _
    $region9: #{tpu_custom_call.1} parent=1 // pred_fallthru
      _
    %v15 = vld [vmem:[%s0] sm:$0xff]
    %v16 = vld [vmem:[%s0 + $0x8] sm:$0xff]
    %v17 = vld [vmem:[%s0 + $0x10] sm:$0x1]
    %v18 = vld [vmem:[%s1] sm:$0x1]
    %v19 = vlaneseq
    %v20 = vshrl.u32 %v19, 7
    %v21 = vsub.s32 0, %v20
    %v22 = vrot.slane %v18, %v21
    %vm23 = vcmp.eq.s32.totalorder %v15, %v22
    %vm24 = vcmp.eq.s32.totalorder %v16, %v22
    %vm25 = vcmp.eq.s32.totalorder %v17, %v22
    %vm26 = vcmp.ne.s32.totalorder %v18, 0
    %v27 = vsel %vm26, 1, 0
    %v28 = vlaneseq
    %v29 = vshrl.u32 %v28, 7
    %v30 = vsub.s32 0, %v29
    %v31 = vrot.slane %v27, %v30
    %vm32 = vcmp.eq.s32.totalorder %v31, 1
    %vm33 = vmand %vm23, %vm32
    %vm34 = vmand %vm24, %vm32
    %vm35 = vmand %vm25, %vm32
    %v36 = vsel %vm33, 1, 0
    %v37 = vsel %vm34, 1, 0
    %v38 = vsel %vm35, 1, 0
    %v39 = vld [vmem:[%s0 + $0x1] sm:$0xff]
    %v40 = vld [vmem:[%s0 + $0x9] sm:$0xff]
    %v41 = vld [vmem:[%s0 + $0x11] sm:$0x1]
    %v42 = vld [vmem:[%s1 + $0x1] sm:$0x1]
    %v43 = vlaneseq
    %v44 = vshrl.u32 %v43, 7
    %v45 = vsub.s32 0, %v44
    %v46 = vrot.slane %v42, %v45
    %vm47 = vcmp.eq.s32.totalorder %v39, %v46
    %vm48 = vcmp.eq.s32.totalorder %v40, %v46
    %vm49 = vcmp.eq.s32.totalorder %v41, %v46
    %vm50 = vcmp.ne.s32.totalorder %v42, 0
    %v51 = vsel %vm50, 1, 0
    %v52 = vlaneseq
    %v53 = vshrl.u32 %v52, 7
    %v54 = vsub.s32 0, %v53
    %v55 = vrot.slane %v51, %v54
    %vm56 = vcmp.eq.s32.totalorder %v55, 1
    %vm57 = vmand %vm47, %vm56
    %vm58 = vmand %vm48, %vm56
    %vm59 = vmand %vm49, %vm56
    %v60 = vsel %vm57, 1, 0
    %v61 = vsel %vm58, 1, 0
    %v62 = vsel %vm59, 1, 0
    %v63 = vadd.s32 %v36, %v60
    %v64 = vadd.s32 %v37, %v61
    %v65 = vadd.s32 %v38, %v62
    %v66 = vld [vmem:[%s0 + $0x2] sm:$0xff]
    %v67 = vld [vmem:[%s0 + $0xa] sm:$0xff]
    %v68 = vld [vmem:[%s0 + $0x12] sm:$0x1]
    %v69 = vld [vmem:[%s1 + $0x2] sm:$0x1]
    %v70 = vlaneseq
    %v71 = vshrl.u32 %v70, 7
    %v72 = vsub.s32 0, %v71
    %v73 = vrot.slane %v69, %v72
    %vm74 = vcmp.eq.s32.totalorder %v66, %v73
    %vm75 = vcmp.eq.s32.totalorder %v67, %v73
    %vm76 = vcmp.eq.s32.totalorder %v68, %v73
    %vm77 = vcmp.ne.s32.totalorder %v69, 0
    %v78 = vsel %vm77, 1, 0
    %v79 = vlaneseq
    %v80 = vshrl.u32 %v79, 7
    %v81 = vsub.s32 0, %v80
    %v82 = vrot.slane %v78, %v81
    %vm83 = vcmp.eq.s32.totalorder %v82, 1
    %vm84 = vmand %vm74, %vm83
    %vm85 = vmand %vm75, %vm83
    %vm86 = vmand %vm76, %vm83
    %v87 = vsel %vm84, 1, 0
    %v88 = vsel %vm85, 1, 0
    %v89 = vsel %vm86, 1, 0
    %v90 = vadd.s32 %v63, %v87
    %v91 = vadd.s32 %v64, %v88
    %v92 = vadd.s32 %v65, %v89
    %v93 = vld [vmem:[%s0 + $0x3] sm:$0xff]
    %v94 = vld [vmem:[%s0 + $0xb] sm:$0xff]
    %v95 = vld [vmem:[%s0 + $0x13] sm:$0x1]
    %v96 = vld [vmem:[%s1 + $0x3] sm:$0x1]
    %v97 = vlaneseq
    %v98 = vshrl.u32 %v97, 7
    %v99 = vsub.s32 0, %v98
    %v100 = vrot.slane %v96, %v99
    %vm101 = vcmp.eq.s32.totalorder %v93, %v100
    %vm102 = vcmp.eq.s32.totalorder %v94, %v100
    %vm103 = vcmp.eq.s32.totalorder %v95, %v100
    %vm104 = vcmp.ne.s32.totalorder %v96, 0
    %v105 = vsel %vm104, 1, 0
    %v106 = vlaneseq
    %v107 = vshrl.u32 %v106, 7
    %v108 = vsub.s32 0, %v107
    %v109 = vrot.slane %v105, %v108
    %vm110 = vcmp.eq.s32.totalorder %v109, 1
    %vm111 = vmand %vm101, %vm110
    %vm112 = vmand %vm102, %vm110
    %vm113 = vmand %vm103, %vm110
    %v114 = vsel %vm111, 1, 0
    %v115 = vsel %vm112, 1, 0
    %v116 = vsel %vm113, 1, 0
    %v117 = vadd.s32 %v90, %v114
    %v118 = vadd.s32 %v91, %v115
    %v119 = vadd.s32 %v92, %v116
    %vm120 = vcmask 15360
    %v121 = vsel %vm120, %v117, 2147483648
    %v122 = vsel %vm120, %v118, 2147483648
    %vm123 = vcmask 8192
    %v124 = vsel %vm123, %v119, 2147483648
    %vm125 = vcmp.gt.s32.totalorder %v121, %v122
    %v126 = vsel %vm125, %v121, %v122
    %vm127 = vcmp.gt.s32.totalorder %v126, %v124
    %v128 = vsel %vm127, %v126, %v124
    %v129 = vrot.slane %v128, 4
    %vm130 = vcmp.gt.s32.totalorder %v128, %v129
    %v131 = vsel %vm130, %v128, %v129
    %v132 = vrot.slane %v131, 2
    %vm133 = vcmp.gt.s32.totalorder %v131, %v132
    %v134 = vsel %vm133, %v131, %v132
    %v135 = vrot.slane %v134, 1
    %vm136 = vcmp.gt.s32.totalorder %v134, %v135
    %v137 = vsel %vm136, %v134, %v135
    %v138 = vlaneseq
    %v139 = vshrl.u32 %v138, 7
    %v140 = vadd.s32 %v139, 8
    %v141 = vadd.s32 %v139, 16
    %vm142 = vcmp.eq.s32.totalorder %v117, %v137
    %vm143 = vcmp.eq.s32.totalorder %v118, %v137
    %vm144 = vcmp.eq.s32.totalorder %v119, %v137
    %v145 = vsel %vm142, %v139, 17
    %v146 = vsel %vm143, %v140, 17
    %v147 = vsel %vm144, %v141, 17
    %v148 = vsel %vm120, %v145, 2147483647
    %v149 = vsel %vm120, %v146, 2147483647
    %v150 = vsel %vm123, %v147, 2147483647
    %vm151 = vcmp.lt.s32.totalorder %v148, %v149
    %v152 = vsel %vm151, %v148, %v149
    %vm153 = vcmp.lt.s32.totalorder %v152, %v150
    %v154 = vsel %vm153, %v152, %v150
    %v155 = vrot.slane %v154, 4
    %vm156 = vcmp.lt.s32.totalorder %v154, %v155
    %v157 = vsel %vm156, %v154, %v155
    %v158 = vrot.slane %v157, 2
    %vm159 = vcmp.lt.s32.totalorder %v157, %v158
    %v160 = vsel %vm159, %v157, %v158
    %v161 = vrot.slane %v160, 1
    %vm162 = vcmp.lt.s32.totalorder %v160, %v161
    %v163 = vsel %vm162, %v160, %v161
    %164 = vst.msk [vmem:[#allocation2] sm:$0x1] %vm123, %v163
    %v165 = vcvt.s32.f32 %v137
    %166 = vst.msk [vmem:[#allocation4] sm:$0x1] %vm123, %v165
    // Predicated region
    $region10: #{tpu_custom_call.1} parent=1 // pred_check
      _
    $region11: #{tpu_custom_call.1} parent=1 // pred_check_branch
      %168 = sbr.rel (0) target = $region13
    $region12: #{tpu_custom_call.1} parent=1 // pred_region
      %s170 = ssub.s32 16, 16
      %171 = vsyncadd [#allocation3], %s170
      %s173 = sshll.u32 [#allocation2], 4
      %s174 = int_to_ptr.vmem [resolvable:$true] %s173
      %176 = dma.vmem_to_hbm [thread:$0]  %s174, 16, %s2, [#allocation3]
    $region13: #{tpu_custom_call.1} parent=1 // pred_fallthru
      _
    // Predicated region
    $region14: #{tpu_custom_call.1} parent=1 // pred_check
      _
    $region15: #{tpu_custom_call.1} parent=1 // pred_check_branch
      %178 = sbr.rel (0) target = $region17
    $region16: #{tpu_custom_call.1} parent=1 // pred_region
      %s180 = ssub.s32 16, 16
      %181 = vsyncadd [#allocation5], %s180
      %s183 = sshll.u32 [#allocation4], 4
      %s184 = int_to_ptr.vmem [resolvable:$true] %s183
      %186 = dma.vmem_to_hbm [thread:$0]  %s184, 16, %s3, [#allocation5]
    $region17: #{tpu_custom_call.1} parent=1 // pred_fallthru
      _
    // Predicated region
    $region18: #{tpu_custom_call.1} parent=1 // pred_check
      _
    $region19: #{tpu_custom_call.1} parent=1 // pred_check_branch
      %188 = sbr.rel (0) target = $region21
    $region20: #{tpu_custom_call.1} parent=1 // pred_region
      %189 = dma.done [#allocation3], 16
    $region21: #{tpu_custom_call.1} parent=1 // pred_fallthru
      _
    // Predicated region
    $region22: #{tpu_custom_call.1} parent=1 // pred_check
      _
    $region23: #{tpu_custom_call.1} parent=1 // pred_check_branch
      %191 = sbr.rel (0) target = $region25
    $region24: #{tpu_custom_call.1} parent=1 // pred_region
      %192 = dma.done [#allocation5], 16
    $region25: #{tpu_custom_call.1} parent=1 // pred_fallthru
      _
    %193 = vsyncpa [#allocation3], 1
    %194 = vsyncpa [#allocation5], 1

</llo_original>
